<compile_context>
chip_gen: v5e
topology: v5e:2x2
jax: 0.10.0
libtpu: 0.0.40
codegen_flags: <defaults>
</compile_context>

<pallas_src>
import jax
import jax.numpy as jnp
from jax import lax
from jax.experimental import pallas as pl
from jax.experimental.pallas import tpu as pltpu

IN_FEATURES = 30
OUT_FEATURES = 30
# (in_features, out_features) per layer, PyTorch module order.
LAYER_DIMS = [(30, 64), (64, 32), (32, 16), (16, 32), (32, 64), (64, 30)]


# ---------------------------------------------------------------------------
# Kernel: fused 6-layer MLP on one batch tile.
#   Input  block: (TB, 30)  f32, batch-major (as produced by the caller).
#   Output block: (30, TB)  bf16, lane-dense (batch on the 128-lane axis).
#   Internal activations are (features, TB): feature dims (16..64) sit on
#   sublanes, batch fills the lanes -> dense vregs, unmasked stores.
# ---------------------------------------------------------------------------
def autoencoder_kernel(
    x_ref,
    w1_ref, b1_ref,
    w2_ref, b2_ref,
    w3_ref, b3_ref,
    w4_ref, b4_ref,
    w5_ref, b5_ref,
    w6_ref, b6_ref,
    out_ref,
):
    # (TB, 30) f32 -> bf16 MXU operand (cast in-kernel; avoids a wrapper pass).
    x = x_ref[...].astype(jnp.bfloat16)

    # Layer 1 fuses the batch-major -> feature-major layout swap into the
    # matmul: (64, 30) x (TB, 30) contracted on the 30-feature dim -> (64, TB).
    h = lax.dot_general(
        w1_ref[...], x,
        dimension_numbers=(((1,), (1,)), ((), ())),
        preferred_element_type=jnp.float32,
    ) + b1_ref[...]
    h = jnp.maximum(h, 0.0).astype(jnp.bfloat16)

    def layer(w_ref, b_ref, h):
        # (out, in) @ (in, TB) -> (out, TB), f32 accumulate, f32 column bias.
        acc = jnp.dot(w_ref[...], h, preferred_element_type=jnp.float32)
        return acc + b_ref[...]

    # Encoder tail + decoder (ReLU in f32, then cast to bf16 MXU operand).
    h = jnp.maximum(layer(w2_ref, b2_ref, h), 0.0).astype(jnp.bfloat16)
    h = jnp.maximum(layer(w3_ref, b3_ref, h), 0.0).astype(jnp.bfloat16)
    h = jnp.maximum(layer(w4_ref, b4_ref, h), 0.0).astype(jnp.bfloat16)
    h = jnp.maximum(layer(w5_ref, b5_ref, h), 0.0).astype(jnp.bfloat16)
    z = layer(w6_ref, b6_ref, h)  # (30, TB) f32 logits

    # Stable sigmoid: clamp (no exp overflow), exp on EUP, exact reciprocal.
    zc = jnp.clip(z, -30.0, 30.0)
    sig = 1.0 / (1.0 + jnp.exp(-zc))

    out_ref[...] = sig.astype(out_ref.dtype)  # bf16, lane-dense store


def _round_up(x, m):
    return (x + m - 1) // m * m


# ---------------------------------------------------------------------------
# Wrapper: tiled, pipelined pallas_call with no input-side transpose pass and
# a single (sliced, bf16->f32) output transpose.
# ---------------------------------------------------------------------------
@jax.jit
def autoencoder_forward(x, params):
    B, F = x.shape
    assert F == IN_FEATURES, "input feature dim must be 30"

    # Batch tile: multiple of 128, capped at 4096, and capped at ~B/2 so that
    # large batches keep >= 2 grid steps (dual-TensorCore sharding on v7x).
    half = -(-B // 2)  # ceil(B / 2)
    TB = min(4096, _round_up(max(1, half), 128))
    Bp = _round_up(B, TB)

    x_in = x.astype(jnp.float32)
    if Bp != B:
        x_in = jnp.pad(x_in, ((0, Bp - B), (0, 0)))

    flat_params = []
    in_specs = [pl.BlockSpec((TB, IN_FEATURES), lambda i: (i, 0))]
    for w, b in params:
        w_b = w.astype(jnp.bfloat16)                 # (out, in) bf16
        b_c = b.reshape(-1, 1).astype(jnp.float32)   # (out, 1)  f32 column
        flat_params.append(w_b)
        flat_params.append(b_c)
        # Constant index maps -> weights/biases stay VMEM-resident across steps.
        in_specs.append(pl.BlockSpec(w_b.shape, lambda i: (0, 0)))
        in_specs.append(pl.BlockSpec(b_c.shape, lambda i: (0, 0)))

    flops = 2 * Bp * sum(fi * fo for fi, fo in LAYER_DIMS)
    bytes_accessed = (
        Bp * IN_FEATURES * 4            # f32 input read
        + Bp * OUT_FEATURES * 2         # bf16 output write
        + sum(w.size * 2 + b.size * 4 for w, b in params)
    )

    out_t = pl.pallas_call(
        autoencoder_kernel,
        out_shape=jax.ShapeDtypeStruct((OUT_FEATURES, Bp), jnp.bfloat16),
        grid=(Bp // TB,),
        in_specs=in_specs,
        out_specs=pl.BlockSpec((OUT_FEATURES, TB), lambda i: (0, i)),
        compiler_params=pltpu.CompilerParams(
            dimension_semantics=("parallel",)),
        cost_estimate=pl.CostEstimate(
            flops=flops,
            transcendentals=Bp * OUT_FEATURES,
            bytes_accessed=bytes_accessed),
    )(x_in, *flat_params)

    # Slice the padded tail BEFORE transposing; fuse the f32 upcast into the
    # same (cheap, bf16) transpose pass.  Result matches PyTorch: (B, 30) f32.
    return jnp.transpose(out_t[:, :B]).astype(jnp.float32)


# ---------------------------------------------------------------------------
# Deterministic parameter init (PyTorch nn.Linear-style uniform bounds).
# Weights stored (out_features, in_features); biases (out_features,).
# ---------------------------------------------------------------------------
def init_params(key):
    params = []
    for fan_in, fan_out in LAYER_DIMS:
        key, kw, kb = jax.random.split(key, 3)
        bound = 1.0 / jnp.sqrt(fan_in)
        w = jax.random.uniform(
            kw, (fan_out, fan_in), dtype=jnp.float32, minval=-bound, maxval=bound)
        b = jax.random.uniform(
            kb, (fan_out,), dtype=jnp.float32, minval=-bound, maxval=bound)
        params.append((w, b))
    return params


# ---------------------------------------------------------------------------
# Pure-JAX f32 reference (PyTorch semantics: y = x @ W.T + b).
# ---------------------------------------------------------------------------
def reference_forward(x, params):
    h = x
    for i, (w, b) in enumerate(params):
        h = h @ w.T + b
        if i < len(params) - 1:
            h = jnp.maximum(h, 0.0)
        else:
            h = jax.nn.sigmoid(h)
    return h


if __name__ == "__main__":
    key = jax.random.PRNGKey(0)
    key, kx = jax.random.split(key)

    B = 8  # small test batch
    x = jax.random.normal(kx, (B, 30), dtype=jnp.float32)
    params = init_params(key)

    out = jax.block_until_ready(autoencoder_forward(x, params))
    ref = reference_forward(x, params)

    assert out.shape == (B, 30)
    assert out.dtype == jnp.float32
    # bf16 MXU operands + bf16 output store => relaxed tolerance vs f32 ref.
    assert jnp.allclose(out, ref, atol=3e-2, rtol=0.0), "mismatch vs reference"

    print("KERNEL_OK")
</pallas_src>

<mosaic_0001>
module attributes {stable_mosaic.version = 11 : i64} {
  func.func @autoencoder_kernel(%arg0: i32, %arg1: memref<128x30xf32, #tpu.memory_space<vmem>>, %arg2: memref<64x30xbf16, #tpu.memory_space<vmem>>, %arg3: memref<64x1xf32, #tpu.memory_space<vmem>>, %arg4: memref<32x64xbf16, #tpu.memory_space<vmem>>, %arg5: memref<32x1xf32, #tpu.memory_space<vmem>>, %arg6: memref<16x32xbf16, #tpu.memory_space<vmem>>, %arg7: memref<16x1xf32, #tpu.memory_space<vmem>>, %arg8: memref<32x16xbf16, #tpu.memory_space<vmem>>, %arg9: memref<32x1xf32, #tpu.memory_space<vmem>>, %arg10: memref<64x32xbf16, #tpu.memory_space<vmem>>, %arg11: memref<64x1xf32, #tpu.memory_space<vmem>>, %arg12: memref<30x64xbf16, #tpu.memory_space<vmem>>, %arg13: memref<30x1xf32, #tpu.memory_space<vmem>>, %arg14: memref<30x128xbf16, #tpu.memory_space<vmem>>) attributes {dimension_semantics = [#tpu.dimension_semantics<parallel>], iteration_bounds = array<i64: 1>, scalar_prefetch = 0 : i64, scratch_operands = 0 : i64, tpu.core_type = #tpu.core_type<tc>, window_params = [{transform_indices = @transform_0, window_bounds = array<i64: 128, 30>}, {pipeline_mode = #tpu.pipeline_mode<synchronous>, transform_indices = @transform_1, window_bounds = array<i64: 64, 30>}, {pipeline_mode = #tpu.pipeline_mode<synchronous>, transform_indices = @transform_2, window_bounds = array<i64: 64, 1>}, {pipeline_mode = #tpu.pipeline_mode<synchronous>, transform_indices = @transform_3, window_bounds = array<i64: 32, 64>}, {pipeline_mode = #tpu.pipeline_mode<synchronous>, transform_indices = @transform_4, window_bounds = array<i64: 32, 1>}, {pipeline_mode = #tpu.pipeline_mode<synchronous>, transform_indices = @transform_5, window_bounds = array<i64: 16, 32>}, {pipeline_mode = #tpu.pipeline_mode<synchronous>, transform_indices = @transform_6, window_bounds = array<i64: 16, 1>}, {pipeline_mode = #tpu.pipeline_mode<synchronous>, transform_indices = @transform_7, window_bounds = array<i64: 32, 16>}, {pipeline_mode = #tpu.pipeline_mode<synchronous>, transform_indices = @transform_8, window_bounds = array<i64: 32, 1>}, {pipeline_mode = #tpu.pipeline_mode<synchronous>, transform_indices = @transform_9, window_bounds = array<i64: 64, 32>}, {pipeline_mode = #tpu.pipeline_mode<synchronous>, transform_indices = @transform_10, window_bounds = array<i64: 64, 1>}, {pipeline_mode = #tpu.pipeline_mode<synchronous>, transform_indices = @transform_11, window_bounds = array<i64: 30, 64>}, {pipeline_mode = #tpu.pipeline_mode<synchronous>, transform_indices = @transform_12, window_bounds = array<i64: 30, 1>}, {transform_indices = @transform_13, window_bounds = array<i64: 30, 128>}]} {
    %c0 = arith.constant 0 : index
    %c0_0 = arith.constant 0 : index
    %0 = vector.load %arg1[%c0, %c0_0] : memref<128x30xf32, #tpu.memory_space<vmem>>, vector<128x30xf32>
    %1 = arith.truncf %0 : vector<128x30xf32> to vector<128x30xbf16>
    %c0_1 = arith.constant 0 : index
    %c0_2 = arith.constant 0 : index
    %2 = vector.load %arg2[%c0_1, %c0_2] : memref<64x30xbf16, #tpu.memory_space<vmem>>, vector<64x30xbf16>
    %cst = arith.constant dense<0.000000e+00> : vector<64x128xf32>
    %3 = tpu.matmul %2, %1, %cst {dimension_numbers = #tpu.dot_dimension_numbers<[1], [1], [0], [0], [0, 0, 1, 0], [], []>} : vector<64x30xbf16>, vector<128x30xbf16>, vector<64x128xf32> -> vector<64x128xf32>
    %c0_3 = arith.constant 0 : index
    %c0_4 = arith.constant 0 : index
    %4 = vector.load %arg3[%c0_3, %c0_4] : memref<64x1xf32, #tpu.memory_space<vmem>>, vector<64x1xf32>
    %5 = vector.broadcast %4 : vector<64x1xf32> to vector<64x128xf32>
    %6 = arith.addf %3, %5 : vector<64x128xf32>
    %cst_5 = arith.constant 0.000000e+00 : f32
    %7 = vector.broadcast %cst_5 : f32 to vector<64x128xf32>
    %8 = arith.maximumf %6, %7 : vector<64x128xf32>
    %9 = arith.truncf %8 : vector<64x128xf32> to vector<64x128xbf16>
    %c0_6 = arith.constant 0 : index
    %c0_7 = arith.constant 0 : index
    %10 = vector.load %arg4[%c0_6, %c0_7] : memref<32x64xbf16, #tpu.memory_space<vmem>>, vector<32x64xbf16>
    %cst_8 = arith.constant dense<0.000000e+00> : vector<32x128xf32>
    %11 = tpu.matmul %10, %9, %cst_8 {dimension_numbers = #tpu.dot_dimension_numbers<[1], [0], [0], [1], [0, 0, 1, 1], [], []>} : vector<32x64xbf16>, vector<64x128xbf16>, vector<32x128xf32> -> vector<32x128xf32>
    %c0_9 = arith.constant 0 : index
    %c0_10 = arith.constant 0 : index
    %12 = vector.load %arg5[%c0_9, %c0_10] : memref<32x1xf32, #tpu.memory_space<vmem>>, vector<32x1xf32>
    %13 = vector.broadcast %12 : vector<32x1xf32> to vector<32x128xf32>
    %14 = arith.addf %11, %13 : vector<32x128xf32>
    %cst_11 = arith.constant 0.000000e+00 : f32
    %15 = vector.broadcast %cst_11 : f32 to vector<32x128xf32>
    %16 = arith.maximumf %14, %15 : vector<32x128xf32>
    %17 = arith.truncf %16 : vector<32x128xf32> to vector<32x128xbf16>
    %c0_12 = arith.constant 0 : index
    %c0_13 = arith.constant 0 : index
    %18 = vector.load %arg6[%c0_12, %c0_13] : memref<16x32xbf16, #tpu.memory_space<vmem>>, vector<16x32xbf16>
    %cst_14 = arith.constant dense<0.000000e+00> : vector<16x128xf32>
    %19 = tpu.matmul %18, %17, %cst_14 {dimension_numbers = #tpu.dot_dimension_numbers<[1], [0], [0], [1], [0, 0, 1, 1], [], []>} : vector<16x32xbf16>, vector<32x128xbf16>, vector<16x128xf32> -> vector<16x128xf32>
    %c0_15 = arith.constant 0 : index
    %c0_16 = arith.constant 0 : index
    %20 = vector.load %arg7[%c0_15, %c0_16] : memref<16x1xf32, #tpu.memory_space<vmem>>, vector<16x1xf32>
    %21 = vector.broadcast %20 : vector<16x1xf32> to vector<16x128xf32>
    %22 = arith.addf %19, %21 : vector<16x128xf32>
    %cst_17 = arith.constant 0.000000e+00 : f32
    %23 = vector.broadcast %cst_17 : f32 to vector<16x128xf32>
    %24 = arith.maximumf %22, %23 : vector<16x128xf32>
    %25 = arith.truncf %24 : vector<16x128xf32> to vector<16x128xbf16>
    %c0_18 = arith.constant 0 : index
    %c0_19 = arith.constant 0 : index
    %26 = vector.load %arg8[%c0_18, %c0_19] : memref<32x16xbf16, #tpu.memory_space<vmem>>, vector<32x16xbf16>
    %cst_20 = arith.constant dense<0.000000e+00> : vector<32x128xf32>
    %27 = tpu.matmul %26, %25, %cst_20 {dimension_numbers = #tpu.dot_dimension_numbers<[1], [0], [0], [1], [0, 0, 1, 1], [], []>} : vector<32x16xbf16>, vector<16x128xbf16>, vector<32x128xf32> -> vector<32x128xf32>
    %c0_21 = arith.constant 0 : index
    %c0_22 = arith.constant 0 : index
    %28 = vector.load %arg9[%c0_21, %c0_22] : memref<32x1xf32, #tpu.memory_space<vmem>>, vector<32x1xf32>
    %29 = vector.broadcast %28 : vector<32x1xf32> to vector<32x128xf32>
    %30 = arith.addf %27, %29 : vector<32x128xf32>
    %cst_23 = arith.constant 0.000000e+00 : f32
    %31 = vector.broadcast %cst_23 : f32 to vector<32x128xf32>
    %32 = arith.maximumf %30, %31 : vector<32x128xf32>
    %33 = arith.truncf %32 : vector<32x128xf32> to vector<32x128xbf16>
    %c0_24 = arith.constant 0 : index
    %c0_25 = arith.constant 0 : index
    %34 = vector.load %arg10[%c0_24, %c0_25] : memref<64x32xbf16, #tpu.memory_space<vmem>>, vector<64x32xbf16>
    %cst_26 = arith.constant dense<0.000000e+00> : vector<64x128xf32>
    %35 = tpu.matmul %34, %33, %cst_26 {dimension_numbers = #tpu.dot_dimension_numbers<[1], [0], [0], [1], [0, 0, 1, 1], [], []>} : vector<64x32xbf16>, vector<32x128xbf16>, vector<64x128xf32> -> vector<64x128xf32>
    %c0_27 = arith.constant 0 : index
    %c0_28 = arith.constant 0 : index
    %36 = vector.load %arg11[%c0_27, %c0_28] : memref<64x1xf32, #tpu.memory_space<vmem>>, vector<64x1xf32>
    %37 = vector.broadcast %36 : vector<64x1xf32> to vector<64x128xf32>
    %38 = arith.addf %35, %37 : vector<64x128xf32>
    %cst_29 = arith.constant 0.000000e+00 : f32
    %39 = vector.broadcast %cst_29 : f32 to vector<64x128xf32>
    %40 = arith.maximumf %38, %39 : vector<64x128xf32>
    %41 = arith.truncf %40 : vector<64x128xf32> to vector<64x128xbf16>
    %c0_30 = arith.constant 0 : index
    %c0_31 = arith.constant 0 : index
    %42 = vector.load %arg12[%c0_30, %c0_31] : memref<30x64xbf16, #tpu.memory_space<vmem>>, vector<30x64xbf16>
    %cst_32 = arith.constant dense<0.000000e+00> : vector<30x128xf32>
    %43 = tpu.matmul %42, %41, %cst_32 {dimension_numbers = #tpu.dot_dimension_numbers<[1], [0], [0], [1], [0, 0, 1, 1], [], []>} : vector<30x64xbf16>, vector<64x128xbf16>, vector<30x128xf32> -> vector<30x128xf32>
    %c0_33 = arith.constant 0 : index
    %c0_34 = arith.constant 0 : index
    %44 = vector.load %arg13[%c0_33, %c0_34] : memref<30x1xf32, #tpu.memory_space<vmem>>, vector<30x1xf32>
    %45 = vector.broadcast %44 : vector<30x1xf32> to vector<30x128xf32>
    %46 = arith.addf %43, %45 : vector<30x128xf32>
    %cst_35 = arith.constant -3.000000e+01 : f32
    %cst_36 = arith.constant 3.000000e+01 : f32
    %47 = vector.broadcast %cst_35 : f32 to vector<30x128xf32>
    %48 = arith.maximumf %47, %46 : vector<30x128xf32>
    %49 = vector.broadcast %cst_36 : f32 to vector<30x128xf32>
    %50 = arith.minimumf %49, %48 : vector<30x128xf32>
    %cst_37 = arith.constant 0.000000e+00 : f32
    %51 = vector.broadcast %cst_37 : f32 to vector<30x128xf32>
    %52 = arith.subf %51, %50 : vector<30x128xf32>
    %53 = math.exp %52 : vector<30x128xf32>
    %cst_38 = arith.constant 1.000000e+00 : f32
    %54 = vector.broadcast %cst_38 : f32 to vector<30x128xf32>
    %55 = arith.addf %54, %53 : vector<30x128xf32>
    %cst_39 = arith.constant 1.000000e+00 : f32
    %56 = vector.broadcast %cst_39 : f32 to vector<30x128xf32>
    %57 = arith.divf %56, %55 : vector<30x128xf32>
    %58 = arith.truncf %57 : vector<30x128xf32> to vector<30x128xbf16>
    %c0_40 = arith.constant 0 : index
    %c0_41 = arith.constant 0 : index
    %59 = vector.load %arg14[%c0_40, %c0_41] : memref<30x128xbf16, #tpu.memory_space<vmem>>, vector<30x128xbf16>
    tpu.vector_store %arg14[%c0_40, %c0_41], %58 {strides = array<i32>} : memref<30x128xbf16, #tpu.memory_space<vmem>>, vector<30x128xbf16>,
    return
  }
  func.func @transform_0(%arg0: i32) -> (i32, i32) {
    %c0_i32 = arith.constant 0 : i32
    %c0_i32_0 = arith.constant 0 : i32
    return %arg0, %c0_i32 : i32, i32
  }
  func.func @transform_1(%arg0: i32) -> (i32, i32) {
    %c0_i32 = arith.constant 0 : i32
    %c0_i32_0 = arith.constant 0 : i32
    %c0_i32_1 = arith.constant 0 : i32
    return %c0_i32, %c0_i32_0 : i32, i32
  }
  func.func @transform_2(%arg0: i32) -> (i32, i32) {
    %c0_i32 = arith.constant 0 : i32
    %c0_i32_0 = arith.constant 0 : i32
    %c0_i32_1 = arith.constant 0 : i32
    return %c0_i32, %c0_i32_0 : i32, i32
  }
  func.func @transform_3(%arg0: i32) -> (i32, i32) {
    %c0_i32 = arith.constant 0 : i32
    %c0_i32_0 = arith.constant 0 : i32
    %c0_i32_1 = arith.constant 0 : i32
    return %c0_i32, %c0_i32_0 : i32, i32
  }
  func.func @transform_4(%arg0: i32) -> (i32, i32) {
    %c0_i32 = arith.constant 0 : i32
    %c0_i32_0 = arith.constant 0 : i32
    %c0_i32_1 = arith.constant 0 : i32
    return %c0_i32, %c0_i32_0 : i32, i32
  }
  func.func @transform_5(%arg0: i32) -> (i32, i32) {
    %c0_i32 = arith.constant 0 : i32
    %c0_i32_0 = arith.constant 0 : i32
    %c0_i32_1 = arith.constant 0 : i32
    return %c0_i32, %c0_i32_0 : i32, i32
  }
  func.func @transform_6(%arg0: i32) -> (i32, i32) {
    %c0_i32 = arith.constant 0 : i32
    %c0_i32_0 = arith.constant 0 : i32
    %c0_i32_1 = arith.constant 0 : i32
    return %c0_i32, %c0_i32_0 : i32, i32
  }
  func.func @transform_7(%arg0: i32) -> (i32, i32) {
    %c0_i32 = arith.constant 0 : i32
    %c0_i32_0 = arith.constant 0 : i32
    %c0_i32_1 = arith.constant 0 : i32
    return %c0_i32, %c0_i32_0 : i32, i32
  }
  func.func @transform_8(%arg0: i32) -> (i32, i32) {
    %c0_i32 = arith.constant 0 : i32
    %c0_i32_0 = arith.constant 0 : i32
    %c0_i32_1 = arith.constant 0 : i32
    return %c0_i32, %c0_i32_0 : i32, i32
  }
  func.func @transform_9(%arg0: i32) -> (i32, i32) {
    %c0_i32 = arith.constant 0 : i32
    %c0_i32_0 = arith.constant 0 : i32
    %c0_i32_1 = arith.constant 0 : i32
    return %c0_i32, %c0_i32_0 : i32, i32
  }
  func.func @transform_10(%arg0: i32) -> (i32, i32) {
    %c0_i32 = arith.constant 0 : i32
    %c0_i32_0 = arith.constant 0 : i32
    %c0_i32_1 = arith.constant 0 : i32
    return %c0_i32, %c0_i32_0 : i32, i32
  }
  func.func @transform_11(%arg0: i32) -> (i32, i32) {
    %c0_i32 = arith.constant 0 : i32
    %c0_i32_0 = arith.constant 0 : i32
    %c0_i32_1 = arith.constant 0 : i32
    return %c0_i32, %c0_i32_0 : i32, i32
  }
  func.func @transform_12(%arg0: i32) -> (i32, i32) {
    %c0_i32 = arith.constant 0 : i32
    %c0_i32_0 = arith.constant 0 : i32
    %c0_i32_1 = arith.constant 0 : i32
    return %c0_i32, %c0_i32_0 : i32, i32
  }
  func.func @transform_13(%arg0: i32) -> (i32, i32) {
    %c0_i32 = arith.constant 0 : i32
    %c0_i32_0 = arith.constant 0 : i32
    return %c0_i32, %arg0 : i32, i32
  }
}

</mosaic_0001>

<llo_original>
// kernel: autoencoder_forward.1
$region0: #{autoencoder_forward.1}
  #allocation0 [shape = 'u32[]', space=smem, size = 0x4, offset = 0x4, fixed_abs, tag = 'smem constant byte address 0x4 - core index']
  #allocation1 [shape = 'u32[72,128]{1,0:T(1,128)}', space=vmem, size = 0x9000, scoped, tag = 'internal scratch']
  %s0 = inlined_call_operand.vmem [shape: f32[128,30], index: 0, kind: input, shape index: {}]
  %s1 = inlined_call_operand.vmem [shape: bf16[64,30], index: 1, kind: input, shape index: {}]
  %s2 = inlined_call_operand.vmem [shape: f32[64,1], index: 2, kind: input, shape index: {}]
  %s3 = inlined_call_operand.vmem [shape: bf16[32,64], index: 3, kind: input, shape index: {}]
  %s4 = inlined_call_operand.vmem [shape: f32[32,1], index: 4, kind: input, shape index: {}]
  %s5 = inlined_call_operand.vmem [shape: bf16[16,32], index: 5, kind: input, shape index: {}]
  %s6 = inlined_call_operand.vmem [shape: f32[16,1], index: 6, kind: input, shape index: {}]
  %s7 = inlined_call_operand.vmem [shape: bf16[32,16], index: 7, kind: input, shape index: {}]
  %s8 = inlined_call_operand.vmem [shape: f32[32,1], index: 8, kind: input, shape index: {}]
  %s9 = inlined_call_operand.vmem [shape: bf16[64,32], index: 9, kind: input, shape index: {}]
  %s10 = inlined_call_operand.vmem [shape: f32[64,1], index: 10, kind: input, shape index: {}]
  %s11 = inlined_call_operand.vmem [shape: bf16[30,64], index: 11, kind: input, shape index: {}]
  %s12 = inlined_call_operand.vmem [shape: f32[30,1], index: 12, kind: input, shape index: {}]
  %s13 = inlined_call_operand.vmem [shape: bf16[30,128], index: 13, kind: output, shape index: {}]
  %s14 = sld [smem:[#allocation0]]
  $region62: #{autoencoder_forward.1} parent=0
    _
  %s16 = ssub.s32 1, %s14
  %s17 = scalar_select 0, %s16, %s14
  // Predicated region
  $region2: #{autoencoder_forward.1} parent=0 // pred_check
    _
  $region3: #{autoencoder_forward.1} parent=0 // pred_check_branch
    %19 = sbr.rel (0) target = $region5
  $region4: #{autoencoder_forward.1} parent=0 // pred_region
    _
  $region5: #{autoencoder_forward.1} parent=0 // pred_fallthru
    _
  // Predicated region
  $region6: #{autoencoder_forward.1} parent=0 // pred_check
    _
  $region7: #{autoencoder_forward.1} parent=0 // pred_check_branch
    %21 = sbr.rel (0) target = $region9
  $region8: #{autoencoder_forward.1} parent=0 // pred_region
    _
  $region9: #{autoencoder_forward.1} parent=0 // pred_fallthru
    _
  // Predicated region
  $region10: #{autoencoder_forward.1} parent=0 // pred_check
    _
  $region11: #{autoencoder_forward.1} parent=0 // pred_check_branch
    %23 = sbr.rel (0) target = $region13
  $region12: #{autoencoder_forward.1} parent=0 // pred_region
    _
  $region13: #{autoencoder_forward.1} parent=0 // pred_fallthru
    _
  // Predicated region
  $region14: #{autoencoder_forward.1} parent=0 // pred_check
    _
  $region15: #{autoencoder_forward.1} parent=0 // pred_check_branch
    %25 = sbr.rel (0) target = $region17
  $region16: #{autoencoder_forward.1} parent=0 // pred_region
    _
  $region17: #{autoencoder_forward.1} parent=0 // pred_fallthru
    _
  // Predicated region
  $region18: #{autoencoder_forward.1} parent=0 // pred_check
    _
  $region19: #{autoencoder_forward.1} parent=0 // pred_check_branch
    %27 = sbr.rel (0) target = $region21
  $region20: #{autoencoder_forward.1} parent=0 // pred_region
    _
  $region21: #{autoencoder_forward.1} parent=0 // pred_fallthru
    _
  // Predicated region
  $region22: #{autoencoder_forward.1} parent=0 // pred_check
    _
  $region23: #{autoencoder_forward.1} parent=0 // pred_check_branch
    %29 = sbr.rel (0) target = $region25
  $region24: #{autoencoder_forward.1} parent=0 // pred_region
    _
  $region25: #{autoencoder_forward.1} parent=0 // pred_fallthru
    _
  // Predicated region
  $region26: #{autoencoder_forward.1} parent=0 // pred_check
    _
  $region27: #{autoencoder_forward.1} parent=0 // pred_check_branch
    %31 = sbr.rel (0) target = $region29
  $region28: #{autoencoder_forward.1} parent=0 // pred_region
    _
  $region29: #{autoencoder_forward.1} parent=0 // pred_fallthru
    _
  // Predicated region
  $region30: #{autoencoder_forward.1} parent=0 // pred_check
    _
  $region31: #{autoencoder_forward.1} parent=0 // pred_check_branch
    %33 = sbr.rel (0) target = $region33
  $region32: #{autoencoder_forward.1} parent=0 // pred_region
    _
  $region33: #{autoencoder_forward.1} parent=0 // pred_fallthru
    _
  // Predicated region
  $region34: #{autoencoder_forward.1} parent=0 // pred_check
    _
  $region35: #{autoencoder_forward.1} parent=0 // pred_check_branch
    %35 = sbr.rel (0) target = $region37
  $region36: #{autoencoder_forward.1} parent=0 // pred_region
    _
  $region37: #{autoencoder_forward.1} parent=0 // pred_fallthru
    _
  // Predicated region
  $region38: #{autoencoder_forward.1} parent=0 // pred_check
    _
  $region39: #{autoencoder_forward.1} parent=0 // pred_check_branch
    %37 = sbr.rel (0) target = $region41
  $region40: #{autoencoder_forward.1} parent=0 // pred_region
    _
  $region41: #{autoencoder_forward.1} parent=0 // pred_fallthru
    _
  // Predicated region
  $region42: #{autoencoder_forward.1} parent=0 // pred_check
    _
  $region43: #{autoencoder_forward.1} parent=0 // pred_check_branch
    %39 = sbr.rel (0) target = $region45
  $region44: #{autoencoder_forward.1} parent=0 // pred_region
    _
  $region45: #{autoencoder_forward.1} parent=0 // pred_fallthru
    _
  // Predicated region
  $region46: #{autoencoder_forward.1} parent=0 // pred_check
    _
  $region47: #{autoencoder_forward.1} parent=0 // pred_check_branch
    %41 = sbr.rel (0) target = $region49
  $region48: #{autoencoder_forward.1} parent=0 // pred_region
    _
  $region49: #{autoencoder_forward.1} parent=0 // pred_fallthru
    _
  // Predicated region
  $region50: #{autoencoder_forward.1} parent=0 // pred_check
    _
  $region51: #{autoencoder_forward.1} parent=0 // pred_check_branch
    %43 = sbr.rel (0) target = $region53
  $region52: #{autoencoder_forward.1} parent=0 // pred_region
    _
  $region53: #{autoencoder_forward.1} parent=0 // pred_fallthru
    _
  %v45 = vld [vmem:[%s0] sm:$0xff]
  %v46 = vld [vmem:[%s0 + $0x8] sm:$0xff]
  %v47 = vld [vmem:[%s0 + $0x10] sm:$0xff]
  %v48 = vld [vmem:[%s0 + $0x18] sm:$0xff]
  %v49 = vld [vmem:[%s0 + $0x20] sm:$0xff]
  %v50 = vld [vmem:[%s0 + $0x28] sm:$0xff]
  %v51 = vld [vmem:[%s0 + $0x30] sm:$0xff]
  %v52 = vld [vmem:[%s0 + $0x38] sm:$0xff]
  %v53 = vld [vmem:[%s0 + $0x40] sm:$0xff]
  %v54 = vld [vmem:[%s0 + $0x48] sm:$0xff]
  %v55 = vld [vmem:[%s0 + $0x50] sm:$0xff]
  %v56 = vld [vmem:[%s0 + $0x58] sm:$0xff]
  %v57 = vld [vmem:[%s0 + $0x60] sm:$0xff]
  %v58 = vld [vmem:[%s0 + $0x68] sm:$0xff]
  %v59 = vld [vmem:[%s0 + $0x70] sm:$0xff]
  %v60 = vld [vmem:[%s0 + $0x78] sm:$0xff]
  %v61 = vpack.c.bf16 %v46, %v45
  %v62 = vpack.c.bf16 %v48, %v47
  %v63 = vpack.c.bf16 %v50, %v49
  %v64 = vpack.c.bf16 %v52, %v51
  %v65 = vpack.c.bf16 %v54, %v53
  %v66 = vpack.c.bf16 %v56, %v55
  %v67 = vpack.c.bf16 %v58, %v57
  %v68 = vpack.c.bf16 %v60, %v59
  %v69 = vld [vmem:[%s1] sm:$0xf]
  %v70 = vld [vmem:[%s1 + $0x4] sm:$0xf]
  %v71 = vld [vmem:[%s1 + $0x8] sm:$0xf]
  %v72 = vld [vmem:[%s1 + $0xc] sm:$0xf]
  %v73 = vld [vmem:[%s1 + $0x10] sm:$0xf]
  %v74 = vld [vmem:[%s1 + $0x14] sm:$0xf]
  %v75 = vld [vmem:[%s1 + $0x18] sm:$0xf]
  %v76 = vld [vmem:[%s1 + $0x1c] sm:$0xf]
  %v77 = vld [vmem:[%s2] sm:$0xff]
  %v78 = vld [vmem:[%s2 + $0x8] sm:$0xff]
  %v79 = vld [vmem:[%s2 + $0x10] sm:$0xff]
  %v80 = vld [vmem:[%s2 + $0x18] sm:$0xff]
  %v81 = vld [vmem:[%s2 + $0x20] sm:$0xff]
  %v82 = vld [vmem:[%s2 + $0x28] sm:$0xff]
  %v83 = vld [vmem:[%s2 + $0x30] sm:$0xff]
  %v84 = vld [vmem:[%s2 + $0x38] sm:$0xff]
  %86 = vset.pattern.permute.xlu0 0
  %87 = vperm.xlu0 %86, %v77
  %v88 = vpop.permute.xlu0 %87
  %91 = vset.pattern.permute.xlu0 0
  %92 = vperm.xlu0 %91, %v78
  %v93 = vpop.permute.xlu0 %92
  %96 = vset.pattern.permute.xlu0 0
  %97 = vperm.xlu0 %96, %v79
  %v98 = vpop.permute.xlu0 %97
  %101 = vset.pattern.permute.xlu0 0
  %102 = vperm.xlu0 %101, %v80
  %v103 = vpop.permute.xlu0 %102
  %106 = vset.pattern.permute.xlu0 0
  %107 = vperm.xlu0 %106, %v81
  %v108 = vpop.permute.xlu0 %107
  %111 = vset.pattern.permute.xlu0 0
  %112 = vperm.xlu0 %111, %v82
  %v113 = vpop.permute.xlu0 %112
  %116 = vset.pattern.permute.xlu0 0
  %117 = vperm.xlu0 %116, %v83
  %v118 = vpop.permute.xlu0 %117
  %121 = vset.pattern.permute.xlu0 0
  %122 = vperm.xlu0 %121, %v84
  %v123 = vpop.permute.xlu0 %122
  %v133 = vunpack.c.l.b16 %v69
  %v134 = vunpack.c.l.b16 %v70
  %v135 = vunpack.c.l.b16 %v71
  %v136 = vunpack.c.l.b16 %v72
  %v137 = vunpack.c.l.b16 %v73
  %v138 = vunpack.c.l.b16 %v74
  %v139 = vunpack.c.l.b16 %v75
  %v140 = vunpack.c.l.b16 %v76
  %v141 = vpack.c.b16 %v134, %v133
  %v142 = vpack.c.b16 %v136, %v135
  %v143 = vpack.c.b16 %v138, %v137
  %v144 = vpack.c.b16 %v140, %v139
  %vm145 = vcmask 244736
  %v147 = vsel %vm145, %v141, 0
  %v150 = vsel %vm145, %v142, 0
  %v153 = vsel %vm145, %v143, 0
  %v156 = vsel %vm145, %v144, 0
  %v159 = vsel %vm145, %v61, 0
  %v162 = vsel %vm145, %v62, 0
  %v165 = vsel %vm145, %v63, 0
  %v168 = vsel %vm145, %v64, 0
  %v171 = vsel %vm145, %v65, 0
  %v174 = vsel %vm145, %v66, 0
  %v177 = vsel %vm145, %v67, 0
  %v180 = vsel %vm145, %v68, 0
  %182 = vmatpush.bf16.xpose.msra.mxu0 %v180
  %183 = vmatpush.bf16.xpose.msra.mxu0 %v177
  %184 = vmatpush.bf16.xpose.msra.mxu0 %v174
  %185 = vmatpush.bf16.xpose.msra.mxu0 %v171
  %186 = vmatpush.bf16.xpose.msra.mxu0 %v168
  %187 = vmatpush.bf16.xpose.msra.mxu0 %v165
  %188 = vmatpush.bf16.xpose.msra.mxu0 %v162
  %189 = vmatpush.bf16.xpose.msra.mxu0 %v159
  %190 = vmatmul.bf16.gmra.mxu0 %v147
  %v191 = vpop.f32.mrf.mxu0
  %v192 = vadd.f32 %v88, %v191
  %v193 = vpop.f32.mrf.mxu0
  %v194 = vadd.f32 %v93, %v193
  %195 = vmatmul.bf16.gmra.mxu0 %v150
  %v196 = vpop.f32.mrf.mxu0
  %v197 = vadd.f32 %v98, %v196
  %v198 = vpop.f32.mrf.mxu0
  %v199 = vadd.f32 %v103, %v198
  %200 = vmatmul.bf16.gmra.mxu0 %v153
  %v201 = vpop.f32.mrf.mxu0
  %v202 = vadd.f32 %v108, %v201
  %v203 = vpop.f32.mrf.mxu0
  %v204 = vadd.f32 %v113, %v203
  %205 = vmatmul.bf16.gmra.mxu0 %v156
  %v206 = vpop.f32.mrf.mxu0
  %v207 = vadd.f32 %v118, %v206
  %v208 = vpop.f32.mrf.mxu0
  %v209 = vadd.f32 %v123, %v208
  %210 = vdwg.mxu0
  %v211 = vmax.f32 %v192, 0.0
  %v212 = vmax.f32 %v194, 0.0
  %v213 = vmax.f32 %v197, 0.0
  %v214 = vmax.f32 %v199, 0.0
  %v215 = vmax.f32 %v202, 0.0
  %v216 = vmax.f32 %v204, 0.0
  %v217 = vmax.f32 %v207, 0.0
  %v218 = vmax.f32 %v209, 0.0
  %v219 = vpack.c.bf16 %v212, %v211
  %v220 = vpack.c.bf16 %v214, %v213
  %v221 = vpack.c.bf16 %v216, %v215
  %v222 = vpack.c.bf16 %v218, %v217
  %v223 = vld [vmem:[%s3] sm:$0xf]
  %v224 = vld [vmem:[%s3 + $0x4] sm:$0xf]
  %v225 = vld [vmem:[%s3 + $0x8] sm:$0xf]
  %v226 = vld [vmem:[%s3 + $0xc] sm:$0xf]
  %v227 = vld [vmem:[%s4] sm:$0xff]
  %v228 = vld [vmem:[%s4 + $0x8] sm:$0xff]
  %v229 = vld [vmem:[%s4 + $0x10] sm:$0xff]
  %v230 = vld [vmem:[%s4 + $0x18] sm:$0xff]
  %232 = vset.pattern.permute.xlu0 0
  %233 = vperm.xlu0 %232, %v227
  %v234 = vpop.permute.xlu0 %233
  %237 = vset.pattern.permute.xlu0 0
  %238 = vperm.xlu0 %237, %v228
  %v239 = vpop.permute.xlu0 %238
  %242 = vset.pattern.permute.xlu0 0
  %243 = vperm.xlu0 %242, %v229
  %v244 = vpop.permute.xlu0 %243
  %247 = vset.pattern.permute.xlu0 0
  %248 = vperm.xlu0 %247, %v230
  %v249 = vpop.permute.xlu0 %248
  %v255 = vunpack.c.l.b16 %v223
  %v256 = vunpack.c.l.b16 %v224
  %v257 = vunpack.c.l.b16 %v225
  %v258 = vunpack.c.l.b16 %v226
  %v259 = vpack.c.b16 %v256, %v255
  %v260 = vpack.c.b16 %v258, %v257
  %vm261 = vcmask 523264
  %v263 = vsel %vm261, %v259, 0
  %v266 = vsel %vm261, %v260, 0
  %268 = vmatpush.bf16.msra.mxu0 0
  %269 = vmatpush.bf16.msra.mxu0 0
  %270 = vmatpush.bf16.msra.mxu0 0
  %271 = vmatpush.bf16.msra.mxu0 0
  %272 = vmatpush.bf16.msra.mxu0 %v222
  %273 = vmatpush.bf16.msra.mxu0 %v221
  %274 = vmatpush.bf16.msra.mxu0 %v220
  %275 = vmatpush.bf16.msra.mxu0 %v219
  %276 = vmatmul.bf16.gmra.mxu0 %v263
  %v277 = vpop.f32.mrf.mxu0
  %v278 = vadd.f32 %v234, %v277
  %v279 = vpop.f32.mrf.mxu0
  %v280 = vadd.f32 %v239, %v279
  %281 = vmatmul.bf16.gmra.mxu0 %v266
  %v282 = vpop.f32.mrf.mxu0
  %v283 = vadd.f32 %v244, %v282
  %v284 = vpop.f32.mrf.mxu0
  %v285 = vadd.f32 %v249, %v284
  %286 = vdwg.mxu0
  %v287 = vmax.f32 %v278, 0.0
  %v288 = vmax.f32 %v280, 0.0
  %v289 = vmax.f32 %v283, 0.0
  %v290 = vmax.f32 %v285, 0.0
  %v291 = vpack.c.bf16 %v288, %v287
  %v292 = vpack.c.bf16 %v290, %v289
  %v293 = vld [vmem:[%s5] sm:$0xf]
  %v294 = vld [vmem:[%s5 + $0x4] sm:$0xf]
  %v295 = vld [vmem:[%s6] sm:$0xff]
  %v296 = vld [vmem:[%s6 + $0x8] sm:$0xff]
  %298 = vset.pattern.permute.xlu0 0
  %299 = vperm.xlu0 %298, %v295
  %v300 = vpop.permute.xlu0 %299
  %303 = vset.pattern.permute.xlu0 0
  %304 = vperm.xlu0 %303, %v296
  %v305 = vpop.permute.xlu0 %304
  %v309 = vunpack.c.l.b16 %v293
  %v310 = vunpack.c.l.b16 %v294
  %v311 = vpack.c.b16 %v310, %v309
  %vm312 = vcmask 261120
  %v314 = vsel %vm312, %v311, 0
  %316 = vmatpush.bf16.msra.mxu0 0
  %317 = vmatpush.bf16.msra.mxu0 0
  %318 = vmatpush.bf16.msra.mxu0 0
  %319 = vmatpush.bf16.msra.mxu0 0
  %320 = vmatpush.bf16.msra.mxu0 0
  %321 = vmatpush.bf16.msra.mxu0 0
  %322 = vmatpush.bf16.msra.mxu0 %v292
  %323 = vmatpush.bf16.msra.mxu0 %v291
  %324 = vmatmul.bf16.gmra.mxu0 %v314
  %v325 = vpop.f32.mrf.mxu0
  %v326 = vadd.f32 %v300, %v325
  %v327 = vpop.f32.mrf.mxu0
  %v328 = vadd.f32 %v305, %v327
  %329 = vdwg.mxu0
  %v330 = vmax.f32 %v326, 0.0
  %v331 = vmax.f32 %v328, 0.0
  %v332 = vpack.c.bf16 %v331, %v330
  %v333 = vld [vmem:[%s7] sm:$0xf]
  %v334 = vld [vmem:[%s7 + $0x4] sm:$0xf]
  %v335 = vld [vmem:[%s7 + $0x8] sm:$0xf]
  %v336 = vld [vmem:[%s7 + $0xc] sm:$0xf]
  %v337 = vld [vmem:[%s8] sm:$0xff]
  %v338 = vld [vmem:[%s8 + $0x8] sm:$0xff]
  %v339 = vld [vmem:[%s8 + $0x10] sm:$0xff]
  %v340 = vld [vmem:[%s8 + $0x18] sm:$0xff]
  %342 = vset.pattern.permute.xlu0 0
  %343 = vperm.xlu0 %342, %v337
  %v344 = vpop.permute.xlu0 %343
  %347 = vset.pattern.permute.xlu0 0
  %348 = vperm.xlu0 %347, %v338
  %v349 = vpop.permute.xlu0 %348
  %352 = vset.pattern.permute.xlu0 0
  %353 = vperm.xlu0 %352, %v339
  %v354 = vpop.permute.xlu0 %353
  %357 = vset.pattern.permute.xlu0 0
  %358 = vperm.xlu0 %357, %v340
  %v359 = vpop.permute.xlu0 %358
  %v365 = vunpack.c.l.b16 %v333
  %v366 = vunpack.c.l.b16 %v334
  %v367 = vunpack.c.l.b16 %v335
  %v368 = vunpack.c.l.b16 %v336
  %v369 = vpack.c.b16 %v366, %v365
  %v370 = vpack.c.b16 %v368, %v367
  %vm371 = vcmask 130048
  %v373 = vsel %vm371, %v369, 0
  %v376 = vsel %vm371, %v370, 0
  %378 = vmatpush.bf16.msra.mxu0 0
  %379 = vmatpush.bf16.msra.mxu0 0
  %380 = vmatpush.bf16.msra.mxu0 0
  %381 = vmatpush.bf16.msra.mxu0 0
  %382 = vmatpush.bf16.msra.mxu0 0
  %383 = vmatpush.bf16.msra.mxu0 0
  %384 = vmatpush.bf16.msra.mxu0 0
  %385 = vmatpush.bf16.msra.mxu0 %v332
  %386 = vmatmul.bf16.gmra.mxu0 %v373
  %v387 = vpop.f32.mrf.mxu0
  %v388 = vadd.f32 %v344, %v387
  %v389 = vpop.f32.mrf.mxu0
  %v390 = vadd.f32 %v349, %v389
  %391 = vmatmul.bf16.gmra.mxu0 %v376
  %v392 = vpop.f32.mrf.mxu0
  %v393 = vadd.f32 %v354, %v392
  %v394 = vpop.f32.mrf.mxu0
  %v395 = vadd.f32 %v359, %v394
  %396 = vdwg.mxu0
  %v397 = vmax.f32 %v388, 0.0
  %v398 = vmax.f32 %v390, 0.0
  %v399 = vmax.f32 %v393, 0.0
  %v400 = vmax.f32 %v395, 0.0
  %v401 = vpack.c.bf16 %v398, %v397
  %v402 = vpack.c.bf16 %v400, %v399
  %v403 = vld [vmem:[%s9] sm:$0xf]
  %v404 = vld [vmem:[%s9 + $0x4] sm:$0xf]
  %v405 = vld [vmem:[%s9 + $0x8] sm:$0xf]
  %v406 = vld [vmem:[%s9 + $0xc] sm:$0xf]
  %v407 = vld [vmem:[%s9 + $0x10] sm:$0xf]
  %v408 = vld [vmem:[%s9 + $0x14] sm:$0xf]
  %v409 = vld [vmem:[%s9 + $0x18] sm:$0xf]
  %v410 = vld [vmem:[%s9 + $0x1c] sm:$0xf]
  %v411 = vld [vmem:[%s10] sm:$0xff]
  %v412 = vld [vmem:[%s10 + $0x8] sm:$0xff]
  %v413 = vld [vmem:[%s10 + $0x10] sm:$0xff]
  %v414 = vld [vmem:[%s10 + $0x18] sm:$0xff]
  %v415 = vld [vmem:[%s10 + $0x20] sm:$0xff]
  %v416 = vld [vmem:[%s10 + $0x28] sm:$0xff]
  %v417 = vld [vmem:[%s10 + $0x30] sm:$0xff]
  %v418 = vld [vmem:[%s10 + $0x38] sm:$0xff]
  %420 = vset.pattern.permute.xlu0 0
  %421 = vperm.xlu0 %420, %v411
  %v422 = vpop.permute.xlu0 %421
  %425 = vset.pattern.permute.xlu0 0
  %426 = vperm.xlu0 %425, %v412
  %v427 = vpop.permute.xlu0 %426
  %430 = vset.pattern.permute.xlu0 0
  %431 = vperm.xlu0 %430, %v413
  %v432 = vpop.permute.xlu0 %431
  %435 = vset.pattern.permute.xlu0 0
  %436 = vperm.xlu0 %435, %v414
  %v437 = vpop.permute.xlu0 %436
  %440 = vset.pattern.permute.xlu0 0
  %441 = vperm.xlu0 %440, %v415
  %v442 = vpop.permute.xlu0 %441
  %445 = vset.pattern.permute.xlu0 0
  %446 = vperm.xlu0 %445, %v416
  %v447 = vpop.permute.xlu0 %446
  %450 = vset.pattern.permute.xlu0 0
  %451 = vperm.xlu0 %450, %v417
  %v452 = vpop.permute.xlu0 %451
  %455 = vset.pattern.permute.xlu0 0
  %456 = vperm.xlu0 %455, %v418
  %v457 = vpop.permute.xlu0 %456
  %v467 = vunpack.c.l.b16 %v403
  %v468 = vunpack.c.l.b16 %v404
  %v469 = vunpack.c.l.b16 %v405
  %v470 = vunpack.c.l.b16 %v406
  %v471 = vunpack.c.l.b16 %v407
  %v472 = vunpack.c.l.b16 %v408
  %v473 = vunpack.c.l.b16 %v409
  %v474 = vunpack.c.l.b16 %v410
  %v475 = vpack.c.b16 %v468, %v467
  %v476 = vpack.c.b16 %v470, %v469
  %v477 = vpack.c.b16 %v472, %v471
  %v478 = vpack.c.b16 %v474, %v473
  %v480 = vsel %vm312, %v475, 0
  %v483 = vsel %vm312, %v476, 0
  %v486 = vsel %vm312, %v477, 0
  %v489 = vsel %vm312, %v478, 0
  %491 = vmatpush.bf16.msra.mxu0 0
  %492 = vmatpush.bf16.msra.mxu0 0
  %493 = vmatpush.bf16.msra.mxu0 0
  %494 = vmatpush.bf16.msra.mxu0 0
  %495 = vmatpush.bf16.msra.mxu0 0
  %496 = vmatpush.bf16.msra.mxu0 0
  %497 = vmatpush.bf16.msra.mxu0 %v402
  %498 = vmatpush.bf16.msra.mxu0 %v401
  %499 = vmatmul.bf16.gmra.mxu0 %v480
  %v500 = vpop.f32.mrf.mxu0
  %v501 = vadd.f32 %v422, %v500
  %v502 = vpop.f32.mrf.mxu0
  %v503 = vadd.f32 %v427, %v502
  %504 = vmatmul.bf16.gmra.mxu0 %v483
  %v505 = vpop.f32.mrf.mxu0
  %v506 = vadd.f32 %v432, %v505
  %v507 = vpop.f32.mrf.mxu0
  %v508 = vadd.f32 %v437, %v507
  %509 = vmatmul.bf16.gmra.mxu0 %v486
  %v510 = vpop.f32.mrf.mxu0
  %v511 = vadd.f32 %v442, %v510
  %v512 = vpop.f32.mrf.mxu0
  %v513 = vadd.f32 %v447, %v512
  %514 = vmatmul.bf16.gmra.mxu0 %v489
  %v515 = vpop.f32.mrf.mxu0
  %v516 = vadd.f32 %v452, %v515
  %v517 = vpop.f32.mrf.mxu0
  %v518 = vadd.f32 %v457, %v517
  %519 = vdwg.mxu0
  %v520 = vmax.f32 %v501, 0.0
  %v521 = vmax.f32 %v503, 0.0
  %v522 = vmax.f32 %v506, 0.0
  %v523 = vmax.f32 %v508, 0.0
  %v524 = vmax.f32 %v511, 0.0
  %v525 = vmax.f32 %v513, 0.0
  %v526 = vmax.f32 %v516, 0.0
  %v527 = vmax.f32 %v518, 0.0
  %v528 = vpack.c.bf16 %v521, %v520
  %v529 = vpack.c.bf16 %v523, %v522
  %v530 = vpack.c.bf16 %v525, %v524
  %v531 = vpack.c.bf16 %v527, %v526
  %v532 = vld [vmem:[%s11] sm:$0xf]
  %v533 = vld [vmem:[%s11 + $0x4] sm:$0xf]
  %v534 = vld [vmem:[%s11 + $0x8] sm:$0xf]
  %v535 = vld [vmem:[%s11 + $0xc] sm:$0x7]
  %v536 = vld [vmem:[%s12] sm:$0xff]
  %v537 = vld [vmem:[%s12 + $0x8] sm:$0xff]
  %v538 = vld [vmem:[%s12 + $0x10] sm:$0xff]
  %v539 = vld [vmem:[%s12 + $0x18] sm:$0x3f]
  %541 = vset.pattern.permute.xlu0 0
  %542 = vperm.xlu0 %541, %v536
  %v543 = vpop.permute.xlu0 %542
  %546 = vset.pattern.permute.xlu0 0
  %547 = vperm.xlu0 %546, %v537
  %v548 = vpop.permute.xlu0 %547
  %551 = vset.pattern.permute.xlu0 0
  %552 = vperm.xlu0 %551, %v538
  %v553 = vpop.permute.xlu0 %552
  %556 = vset.pattern.permute.xlu0 0
  %557 = vperm.xlu0 %556, %v539
  %v558 = vpop.permute.xlu0 %557
  %v564 = vunpack.c.l.b16 %v532
  %v565 = vunpack.c.l.b16 %v533
  %v566 = vunpack.c.l.b16 %v534
  %v567 = vunpack.c.l.b16 %v535
  %v568 = vpack.c.b16 %v565, %v564
  %v569 = vpack.c.b16 %v567, %v566
  %v571 = vsel %vm261, %v568, 0
  %v574 = vsel %vm261, %v569, 0
  %576 = vmatpush.bf16.msra.mxu0 0
  %577 = vmatpush.bf16.msra.mxu0 0
  %578 = vmatpush.bf16.msra.mxu0 0
  %579 = vmatpush.bf16.msra.mxu0 0
  %580 = vmatpush.bf16.msra.mxu0 %v531
  %581 = vmatpush.bf16.msra.mxu0 %v530
  %582 = vmatpush.bf16.msra.mxu0 %v529
  %583 = vmatpush.bf16.msra.mxu0 %v528
  %584 = vmatmul.bf16.gmra.mxu0 %v571
  %v585 = vpop.f32.mrf.mxu0
  %v586 = vadd.f32 %v543, %v585
  %v587 = vpop.f32.mrf.mxu0
  %v588 = vadd.f32 %v548, %v587
  %589 = vmatmul.bf16.gmra.mxu0 %v574
  %v590 = vpop.f32.mrf.mxu0
  %v591 = vadd.f32 %v553, %v590
  %v592 = vpop.f32.mrf.mxu0
  %v593 = vadd.f32 %v558, %v592
  %594 = vdwg.mxu0
  %v595 = vmax.f32 %v586, -30.0
  %v596 = vmax.f32 %v588, -30.0
  %v597 = vmax.f32 %v591, -30.0
  %v598 = vmax.f32 %v593, -30.0
  %v599 = vmin.f32 %v595, 30.0
  %v600 = vmin.f32 %v596, 30.0
  %v601 = vmin.f32 %v597, 30.0
  %v602 = vmin.f32 %v598, 30.0
  %v603 = vsub.f32 0.0, %v599
  %v604 = vsub.f32 0.0, %v600
  %v605 = vsub.f32 0.0, %v601
  %v606 = vsub.f32 0.0, %v602
  %v607 = vmul.f32 %v603, 1.442695
  %v608 = vpow.pop %v607
  %v609 = vmul.f32 %v604, 1.442695
  %v610 = vpow.pop %v609
  %v611 = vmul.f32 %v605, 1.442695
  %v612 = vpow.pop %v611
  %v613 = vmul.f32 %v606, 1.442695
  %v614 = vpow.pop %v613
  %v615 = vadd.f32 %v608, 1.0
  %v616 = vadd.f32 %v610, 1.0
  %v617 = vadd.f32 %v612, 1.0
  %v618 = vadd.f32 %v614, 1.0
  %v619 = vrcp.pop %v615
  %v620 = vmul.f32 %v615, %v619
  %v621 = vsub.f32 1.0, %v620
  %v622 = vmul.f32 %v619, %v621
  %v623 = vadd.f32 %v619, %v622
  %vm624 = vweird.f32 %v615
  %vm625 = vweird.f32 %v619
  %vm626 = vmor %vm624, %vm625
  %v627 = vsel %vm626, %v619, %v623
  %v628 = vand.u32 2147483647, %v615
  %vm629 = vcmp.eq.f32.partialorder %v628, 8.507059e+37
  %v630 = vand.u32 %v615, 2147483648
  %v631 = vor.u32 1.1754944e-38, %v630
  %v632 = vsel %vm629, %v631, %v627
  %v633 = vmul.f32 1.0, %v632
  %v634 = vrcp.pop %v616
  %v635 = vmul.f32 %v616, %v634
  %v636 = vsub.f32 1.0, %v635
  %v637 = vmul.f32 %v634, %v636
  %v638 = vadd.f32 %v634, %v637
  %vm639 = vweird.f32 %v616
  %vm640 = vweird.f32 %v634
  %vm641 = vmor %vm639, %vm640
  %v642 = vsel %vm641, %v634, %v638
  %v643 = vand.u32 2147483647, %v616
  %vm644 = vcmp.eq.f32.partialorder %v643, 8.507059e+37
  %v645 = vand.u32 %v616, 2147483648
  %v646 = vor.u32 1.1754944e-38, %v645
  %v647 = vsel %vm644, %v646, %v642
  %v648 = vmul.f32 1.0, %v647
  %v649 = vrcp.pop %v617
  %v650 = vmul.f32 %v617, %v649
  %v651 = vsub.f32 1.0, %v650
  %v652 = vmul.f32 %v649, %v651
  %v653 = vadd.f32 %v649, %v652
  %vm654 = vweird.f32 %v617
  %vm655 = vweird.f32 %v649
  %vm656 = vmor %vm654, %vm655
  %v657 = vsel %vm656, %v649, %v653
  %v658 = vand.u32 2147483647, %v617
  %vm659 = vcmp.eq.f32.partialorder %v658, 8.507059e+37
  %v660 = vand.u32 %v617, 2147483648
  %v661 = vor.u32 1.1754944e-38, %v660
  %v662 = vsel %vm659, %v661, %v657
  %v663 = vmul.f32 1.0, %v662
  %v664 = vrcp.pop %v618
  %v665 = vmul.f32 %v618, %v664
  %v666 = vsub.f32 1.0, %v665
  %v667 = vmul.f32 %v664, %v666
  %v668 = vadd.f32 %v664, %v667
  %vm669 = vweird.f32 %v618
  %vm670 = vweird.f32 %v664
  %vm671 = vmor %vm669, %vm670
  %v672 = vsel %vm671, %v664, %v668
  %v673 = vand.u32 2147483647, %v618
  %vm674 = vcmp.eq.f32.partialorder %v673, 8.507059e+37
  %v675 = vand.u32 %v618, 2147483648
  %v676 = vor.u32 1.1754944e-38, %v675
  %v677 = vsel %vm674, %v676, %v672
  %v678 = vmul.f32 1.0, %v677
  %v679 = vpack.c.bf16 %v633, %v633
  %v680 = vpack.c.bf16 %v648, %v648
  %v681 = vpack.c.bf16 %v663, %v663
  %v682 = vpack.c.bf16 %v678, %v678
  %683 = vst [vmem:[%s13] sm:$0xf] %v679
  %684 = vst [vmem:[%s13 + $0x4] sm:$0xf] %v680
  %685 = vst [vmem:[%s13 + $0x8] sm:$0xf] %v681
  %686 = vst [vmem:[%s13 + $0xc] sm:$0x7] %v682
  // Predicated region
  $region54: #{autoencoder_forward.1} parent=0 // pred_check
    _
  $region55: #{autoencoder_forward.1} parent=0 // pred_check_branch
    %688 = sbr.rel (0) target = $region57
  $region56: #{autoencoder_forward.1} parent=0 // pred_region
    _
  $region57: #{autoencoder_forward.1} parent=0 // pred_fallthru
    _
  // Predicated region
  $region58: #{autoencoder_forward.1} parent=0 // pred_check
    _
  $region59: #{autoencoder_forward.1} parent=0 // pred_check_branch
    %690 = sbr.rel (0) target = $region61
  $region60: #{autoencoder_forward.1} parent=0 // pred_region
    _
  $region61: #{autoencoder_forward.1} parent=0 // pred_fallthru
    _

</llo_original>
